<compile_context>
chip_gen: v6e
topology: v6e:2x2x1
jax: 0.10.0
libtpu: 0.0.40
codegen_flags: <defaults>
</compile_context>

<pallas_src>
import math

import jax
import jax.numpy as jnp
from jax.experimental import pallas as pl
from jax.experimental.pallas import tpu as pltpu


# ----------------------------- Pallas kernel ------------------------------- #
def mhsa_kernel(xT_ref, w_ref, b_ref, out_ref):
    # xT_ref : [I, blk]   transposed input columns (VMEM, lane-dense)
    # w_ref  : [1, I]     fully fused weight row  (W_v @ W_hp @ W_out)^T
    # b_ref  : [1]        fused scalar bias (SMEM)
    # out_ref: [1, blk]   sigmoid outputs, lane-dense (one unmasked vst)
    logits = jnp.dot(w_ref[...], xT_ref[...],
                     preferred_element_type=jnp.float32) + b_ref[0]   # [1, blk]
    out_ref[...] = jax.nn.sigmoid(logits)


# ------------------------------- wrapper ----------------------------------- #
def multi_head_self_attention(x, params, num_heads, block_s=2048):
    """x: [S, 1, I] float32.  Returns (out [S, 1], scores [S, H, 1, 1])."""
    S, B, I = x.shape
    assert B == 1, "module only type-checks with batch_size == 1"
    A = params["w_hp_t"].shape[0]
    dk = I // num_heads
    # attention key axis must have length 1 (B*A == H*dk) for this module.
    assert B * A == num_heads * dk

    # ---- algebraic fusion, done once in the wrapper (tiny XLA ops) ----
    w_v_t = params["w_kqv_t"][:, 2 * A:3 * A]                          # [I, A]  (v third)
    w_fused = params["w_hp_t"] @ params["w_out_t"]                     # [A, 1]
    w_combined = (w_v_t @ w_fused).reshape(1, I)                       # [1, I]
    b_fused = (params["b_hp"] @ params["w_out_t"]
               + params["b_out"]).reshape(1)                           # [1]

    # ---- lane-dense, transposed layout: columns are sequence positions ----
    xT = x.reshape(S, I).T                                             # [I, S]

    if S <= block_s:
        blk = S                      # single full-array block (tiny tiles)
        s_pad = S
    else:
        blk = block_s                # multiple of 128; cap keeps VMEM bounded
        assert blk % 128 == 0
        s_pad = pl.cdiv(S, blk) * blk
        xT = jnp.pad(xT, ((0, 0), (0, s_pad - S)))

    grid = (pl.cdiv(s_pad, blk),)

    row = pl.pallas_call(
        mhsa_kernel,
        out_shape=jax.ShapeDtypeStruct((1, s_pad), jnp.float32),
        grid=grid,
        in_specs=[
            pl.BlockSpec((I, blk), lambda i: (0, i)),
            pl.BlockSpec((1, I), lambda i: (0, 0)),
            pl.BlockSpec(memory_space=pltpu.MemorySpace.SMEM),         # fused scalar bias
        ],
        out_specs=pl.BlockSpec((1, blk), lambda i: (0, i)),
        compiler_params=pltpu.CompilerParams(
            dimension_semantics=("parallel",)),
    )(xT, w_combined, b_fused)

    out = row[0, :S].reshape(S, 1)                                     # [S, 1]
    # softmax over a size-1 key axis is identically 1.0 (eval: dropout = id).
    scores = jnp.ones((S, num_heads, 1, 1), dtype=jnp.float32)
    return out, scores


# --------------------------- parameter init -------------------------------- #
def init_params(key, input_size, attention_size):
    I, A = input_size, attention_size

    def xavier_normal(k, fan_in, fan_out, shape):
        std = math.sqrt(2.0 / (fan_in + fan_out))
        return std * jax.random.normal(k, shape, dtype=jnp.float32)

    k1, k2, k3, k4, k5 = jax.random.split(key, 5)
    return {
        # torch Linear weight is [out, in]; we store the transposed [in, out].
        "w_kqv_t": xavier_normal(k1, I, 3 * A, (I, 3 * A)),
        "w_hp_t":  xavier_normal(k2, A, A, (A, A)),
        # torch init sets biases to 0; small nonzero values here so the
        # fused-bias path is actually exercised by the correctness check.
        "b_hp":    0.1 * jax.random.normal(k4, (1, A), dtype=jnp.float32),
        "w_out_t": xavier_normal(k3, A, 1, (A, 1)),
        "b_out":   0.1 * jax.random.normal(k5, (1, 1), dtype=jnp.float32),
    }


# --------------------------- pure-JAX reference ----------------------------- #
def reference(x, params, num_heads):
    """Un-fused reference following the torch module step by step (eval mode)."""
    S, B, I = x.shape
    dk = I // num_heads
    kqv = jnp.einsum("sbi,io->sbo", x, params["w_kqv_t"])
    k, q, v = jnp.split(kqv, 3, axis=-1)
    k = k.reshape(S, num_heads, -1, dk)
    q = q.reshape(S, num_heads, -1, dk)
    v = v.reshape(S, num_heads, -1, dk)
    scores = jnp.einsum("shqd,shkd->shqk", q, k) / math.sqrt(dk)
    scores = jax.nn.softmax(scores, axis=-1)
    out = jnp.einsum("shqk,shkd->shqd", scores, v)
    out = out.reshape(S, -1)
    out = out @ params["w_hp_t"] + params["b_hp"]
    out = jax.nn.sigmoid(out @ params["w_out_t"] + params["b_out"])
    return out, scores


# --------------------------------- main ------------------------------------ #
if __name__ == "__main__":
    seq_len = 16
    input_size = attention_size = 32
    num_heads = 8

    key = jax.random.PRNGKey(0)
    kx, kp = jax.random.split(key)
    x = jax.random.normal(kx, (seq_len, 1, input_size), dtype=jnp.float32)
    params = init_params(kp, input_size, attention_size)

    out, scores = multi_head_self_attention(x, params, num_heads)
    out = jax.block_until_ready(out)
    scores = jax.block_until_ready(scores)

    ref_out, ref_scores = reference(x, params, num_heads)
    assert out.shape == (seq_len, 1)
    assert scores.shape == (seq_len, num_heads, 1, 1)
    assert jnp.allclose(out, ref_out, atol=1e-5, rtol=1e-5)
    assert jnp.allclose(scores, ref_scores, atol=1e-5, rtol=1e-5)

    print("KERNEL_OK")
</pallas_src>

<mosaic_0001>
module attributes {stable_mosaic.version = 11 : i64} {
  func.func @mhsa_kernel(%arg0: i32, %arg1: memref<32x16xf32, #tpu.memory_space<vmem>>, %arg2: memref<1x32xf32, #tpu.memory_space<vmem>>, %arg3: memref<1xf32, #tpu.memory_space<smem>>, %arg4: memref<1x16xf32, #tpu.memory_space<vmem>>) attributes {dimension_semantics = [#tpu.dimension_semantics<parallel>], iteration_bounds = array<i64: 1>, scalar_prefetch = 0 : i64, scratch_operands = 0 : i64, tpu.core_type = #tpu.core_type<tc>, window_params = [{transform_indices = @transform_0, window_bounds = array<i64: 32, 16>}, {pipeline_mode = #tpu.pipeline_mode<synchronous>, transform_indices = @transform_1, window_bounds = array<i64: 1, 32>}, {transform_indices = @transform_2, window_bounds = array<i64: 1>}, {transform_indices = @transform_3, window_bounds = array<i64: 1, 16>}]} {
    %c0 = arith.constant 0 : index
    %c0_0 = arith.constant 0 : index
    %0 = vector.load %arg2[%c0, %c0_0] : memref<1x32xf32, #tpu.memory_space<vmem>>, vector<1x32xf32>
    %c0_1 = arith.constant 0 : index
    %c0_2 = arith.constant 0 : index
    %1 = vector.load %arg1[%c0_1, %c0_2] : memref<32x16xf32, #tpu.memory_space<vmem>>, vector<32x16xf32>
    %cst = arith.constant dense<0.000000e+00> : vector<1x16xf32>
    %2 = tpu.matmul %0, %1, %cst {dimension_numbers = #tpu.dot_dimension_numbers<[1], [0], [0], [1], [0, 0, 1, 1], [], []>} : vector<1x32xf32>, vector<32x16xf32>, vector<1x16xf32> -> vector<1x16xf32>
    %c0_3 = arith.constant 0 : index
    %3 = memref.load %arg3[%c0_3] : memref<1xf32, #tpu.memory_space<smem>>
    %4 = vector.broadcast %3 : f32 to vector<1x16xf32>
    %5 = arith.addf %2, %4 : vector<1x16xf32>
    %6 = arith.negf %5 : vector<1x16xf32>
    %7 = math.exp %6 : vector<1x16xf32>
    %cst_4 = arith.constant 1.000000e+00 : f32
    %8 = vector.broadcast %cst_4 : f32 to vector<1x16xf32>
    %9 = arith.addf %8, %7 : vector<1x16xf32>
    %10 = arith.divf %8, %9 : vector<1x16xf32>
    %c0_5 = arith.constant 0 : index
    %c0_6 = arith.constant 0 : index
    %11 = vector.load %arg4[%c0_5, %c0_6] : memref<1x16xf32, #tpu.memory_space<vmem>>, vector<1x16xf32>
    tpu.vector_store %arg4[%c0_5, %c0_6], %10 {strides = array<i32>} : memref<1x16xf32, #tpu.memory_space<vmem>>, vector<1x16xf32>,
    return
  }
  func.func @transform_0(%arg0: i32) -> (i32, i32) {
    %c0_i32 = arith.constant 0 : i32
    %c0_i32_0 = arith.constant 0 : i32
    return %c0_i32, %arg0 : i32, i32
  }
  func.func @transform_1(%arg0: i32) -> (i32, i32) {
    %c0_i32 = arith.constant 0 : i32
    %c0_i32_0 = arith.constant 0 : i32
    %c0_i32_1 = arith.constant 0 : i32
    return %c0_i32, %c0_i32_0 : i32, i32
  }
  func.func @transform_2(%arg0: i32) -> i32 {
    %c0_i32 = arith.constant 0 : i32
    %c0_i32_0 = arith.constant 0 : i32
    return %c0_i32 : i32
  }
  func.func @transform_3(%arg0: i32) -> (i32, i32) {
    %c0_i32 = arith.constant 0 : i32
    %c0_i32_0 = arith.constant 0 : i32
    return %c0_i32, %arg0 : i32, i32
  }
}

</mosaic_0001>

<llo_original>
// kernel: tpu_custom_call.1
$region0: #{tpu_custom_call.1}
  #allocation0 [shape = 'u32[]', space=smem, size = 0x4, offset = 0x4, fixed_abs, tag = 'smem constant byte address 0x4 - core index']
  #allocation1 [shape = 'u32[144,128]{1,0:T(1,128)}', space=vmem, size = 0x12000, scoped, tag = 'internal scratch']
  #allocation2 [shape = 'f32[1]{0:T(128)S(6)}', space=smem, size = 0x200, scoped, tag = 'scoped memory for tpu_custom_call.1']
  %s0 = inlined_call_operand.vmem [shape: f32[32,16], index: 0, kind: input, shape index: {}]
  %s1 = inlined_call_operand.vmem [shape: f32[1,32], index: 1, kind: input, shape index: {}]
  %s2 = inlined_call_operand.<no memory space> [shape: f32[1], index: 2, kind: input, shape index: {}]
  %s3 = inlined_call_operand.hbm [shape: f32[1,16], index: 3, kind: output, shape index: {}]
  %s4 = sld [smem:[#allocation0]]
  $region22: #{tpu_custom_call.1} parent=0
    _
  %s6 = ssub.s32 1, %s4
  %s7 = scalar_select 0, %s6, %s4
  %8 = sst [smem:[#allocation2]] %s2
  $region1: #{tpu_custom_call.1} parent=0
    #allocation3 [shape = 'u8[512]{0}', space=vmem, size = 0x400, scoped, tag = 'output window, operand 0, single buffered']
    #allocation4 [shape = 's32[1]{0}', space=sflag, size = 0x4, scoped, tag = 'scoped memory for tpu_custom_call.1']
    %9 = vsyncpa [#allocation4], 0
    // Predicated region
    $region2: #{tpu_custom_call.1} parent=1 // pred_check
      _
    $region3: #{tpu_custom_call.1} parent=1 // pred_check_branch
      %11 = sbr.rel (0) target = $region5
    $region4: #{tpu_custom_call.1} parent=1 // pred_region
      _
    $region5: #{tpu_custom_call.1} parent=1 // pred_fallthru
      _
    // Predicated region
    $region6: #{tpu_custom_call.1} parent=1 // pred_check
      _
    $region7: #{tpu_custom_call.1} parent=1 // pred_check_branch
      %13 = sbr.rel (0) target = $region9
    $region8: #{tpu_custom_call.1} parent=1 // pred_region
      _
    $region9: #{tpu_custom_call.1} parent=1 // pred_fallthru
      _
    // Predicated region
    $region10: #{tpu_custom_call.1} parent=1 // pred_check
      _
    $region11: #{tpu_custom_call.1} parent=1 // pred_check_branch
      %15 = sbr.rel (0) target = $region13
    $region12: #{tpu_custom_call.1} parent=1 // pred_region
      _
    $region13: #{tpu_custom_call.1} parent=1 // pred_fallthru
      _
    %v16 = vld [vmem:[%s1] sm:$0x1]
    %v17 = vld [vmem:[%s0] sm:$0xff]
    %v18 = vld [vmem:[%s0 + $0x8] sm:$0xff]
    %v19 = vld [vmem:[%s0 + $0x10] sm:$0xff]
    %v20 = vld [vmem:[%s0 + $0x18] sm:$0xff]
    %s21 = sld [smem:[#allocation2]]
    %v22 = vstv %s21
    %vm23 = vcmask 261120
    %v25 = vsel %vm23, %v16, 0
    %27 = vmatprep.subr.mxu0 0.0
    %28 = vmatpush1.msra.mxu0 0.0
    %29 = vmatprep.subr.mxu0 0.0
    %30 = vmatpush1.msra.mxu0 0.0
    %31 = vmatprep.subr.mxu0 0.0
    %32 = vmatpush1.msra.mxu0 0.0
    %33 = vmatprep.subr.mxu0 0.0
    %34 = vmatpush1.msra.mxu0 0.0
    %35 = vmatprep.subr.mxu0 0.0
    %36 = vmatpush1.msra.mxu0 0.0
    %37 = vmatprep.subr.mxu0 0.0
    %38 = vmatpush1.msra.mxu0 0.0
    %39 = vmatprep.subr.mxu0 0.0
    %40 = vmatpush1.msra.mxu0 0.0
    %41 = vmatprep.subr.mxu0 0.0
    %42 = vmatpush1.msra.mxu0 0.0
    %43 = vmatprep.subr.mxu0 0.0
    %44 = vmatpush1.msra.mxu0 0.0
    %45 = vmatprep.subr.mxu0 0.0
    %46 = vmatpush1.msra.mxu0 0.0
    %47 = vmatprep.subr.mxu0 0.0
    %48 = vmatpush1.msra.mxu0 0.0
    %49 = vmatprep.subr.mxu0 0.0
    %50 = vmatpush1.msra.mxu0 0.0
    %51 = vmatprep.subr.mxu0 0.0
    %52 = vmatpush1.msra.mxu0 %v20
    %53 = vmatprep.subr.mxu0 0.0
    %54 = vmatpush1.msra.mxu0 %v19
    %55 = vmatprep.subr.mxu0 0.0
    %56 = vmatpush1.msra.mxu0 %v18
    %57 = vmatprep.subr.mxu0 0.0
    %58 = vmatpush1.msra.mxu0 %v17
    %59 = vmatprep.subr.mxu0 0.0
    %60 = vmatpush2.msra.mxu0 0.0
    %61 = vmatprep.subr.mxu0 0.0
    %62 = vmatpush2.msra.mxu0 0.0
    %63 = vmatprep.subr.mxu0 0.0
    %64 = vmatpush2.msra.mxu0 0.0
    %65 = vmatprep.subr.mxu0 0.0
    %66 = vmatpush2.msra.mxu0 0.0
    %67 = vmatprep.subr.mxu0 0.0
    %68 = vmatpush2.msra.mxu0 0.0
    %69 = vmatprep.subr.mxu0 0.0
    %70 = vmatpush2.msra.mxu0 0.0
    %71 = vmatprep.subr.mxu0 0.0
    %72 = vmatpush2.msra.mxu0 0.0
    %73 = vmatprep.subr.mxu0 0.0
    %74 = vmatpush2.msra.mxu0 0.0
    %75 = vmatprep.subr.mxu0 0.0
    %76 = vmatpush2.msra.mxu0 0.0
    %77 = vmatprep.subr.mxu0 0.0
    %78 = vmatpush2.msra.mxu0 0.0
    %79 = vmatprep.subr.mxu0 0.0
    %80 = vmatpush2.msra.mxu0 0.0
    %81 = vmatprep.subr.mxu0 0.0
    %82 = vmatpush2.msra.mxu0 0.0
    %83 = vmatprep.subr.mxu0 0.0
    %84 = vmatpush2.msra.mxu0 0.0
    %85 = vmatprep.subr.mxu0 0.0
    %86 = vmatpush2.msra.mxu0 0.0
    %87 = vmatprep.subr.mxu0 0.0
    %88 = vmatpush2.msra.mxu0 0.0
    %89 = vmatprep.subr.mxu0 0.0
    %90 = vmatpush2.msra.mxu0 0.0
    %91 = vmatprep.mubr.f32.mxu0 0.0
    %92 = vmatmul.mubr.f32.gmra.mxu0 %v25
    %v93 = vpop.f32.mrf.mxu0
    %v94 = vadd.f32 %v22, %v93
    %v95 = vpop.f32.mrf.mxu0
    %96 = vdwg.mxu0
    %v97 = vxor.u32 %v94, 2147483648
    %v98 = vmul.f32 %v97, 1.442695
    %v99 = vpow.pop %v98
    %v100 = vadd.f32 %v99, 1.0
    %v101 = vrcp.pop %v100
    %v102 = vmul.f32 1.0, %v101
    %vm103 = vcmask 122880
    %104 = vst.msk [vmem:[#allocation3] sm:$0x1] %vm103, %v102
    // Predicated region
    $region14: #{tpu_custom_call.1} parent=1 // pred_check
      _
    $region15: #{tpu_custom_call.1} parent=1 // pred_check_branch
      %106 = sbr.rel (0) target = $region17
    $region16: #{tpu_custom_call.1} parent=1 // pred_region
      %s108 = ssub.s32 16, 16
      %109 = vsyncadd [#allocation4], %s108
      %s111 = sshll.u32 [#allocation3], 4
      %s112 = int_to_ptr.vmem [resolvable:$true] %s111
      %114 = dma.vmem_to_hbm [thread:$0]  %s112, 16, %s3, [#allocation4]
    $region17: #{tpu_custom_call.1} parent=1 // pred_fallthru
      _
    // Predicated region
    $region18: #{tpu_custom_call.1} parent=1 // pred_check
      _
    $region19: #{tpu_custom_call.1} parent=1 // pred_check_branch
      %116 = sbr.rel (0) target = $region21
    $region20: #{tpu_custom_call.1} parent=1 // pred_region
      %117 = dma.done [#allocation4], 16
    $region21: #{tpu_custom_call.1} parent=1 // pred_fallthru
      _
    %118 = vsyncpa [#allocation4], 1

</llo_original>
